<compile_context>
chip_gen: v5e
topology: v5e:2x2
jax: 0.10.0
libtpu: 0.0.40
codegen_flags: <defaults>
</compile_context>

<pallas_src>
import functools

import jax
import jax.numpy as jnp
from jax import lax
from jax.experimental import pallas as pl
from jax.experimental.pallas import tpu as pltpu

_BN_EPS = 1e-5


# ------------------------------ fused kernel --------------------------------

def _ffc_fused_kernel(x_ref, ws_ref, pp_ref, dftf_ref, dfti_ref, o_ref, *,
                      K, pad, L, B, in_cl, in_cg, out_cl, out_cg, ch, F):
    """Whole FFC forward (both branches), full batch, one invocation.

    Activation layout is 2-D (channels, batch*length): every conv / 1x1 conv /
    DFT is a plain 2-D matmul and BatchNorm's (batch, length) reduction is a
    lane reduction.
    """
    f32 = jnp.float32
    in_total = in_cl + in_cg
    out_total = out_cl + out_cg
    bl = B * L

    x = x_ref[...].astype(f32)                       # (in_total, B*L)

    # ---- hoisted iota for the in-kernel conv zero-padding masks ------------
    pos = lax.broadcasted_iota(jnp.int32, (in_total, bl), 1) % L

    def shift(v, sh):
        # out[:, b*L + n] = v[:, b*L + n + sh], zero outside each length-L
        # segment (this IS the conv zero-padding, done in-kernel).
        if sh == 0:
            return v
        if sh > 0:
            moved = jnp.concatenate(
                [v[:, sh:], jnp.zeros((in_total, sh), f32)], axis=1)
            return jnp.where(pos < (L - sh), moved, 0.0)
        moved = jnp.concatenate(
            [jnp.zeros((in_total, -sh), f32), v[:, :sh]], axis=1)
        return jnp.where(pos >= (-sh), moved, 0.0)

    # ---- spatial convs: K accumulated shifted matmuls -----------------------
    # ws_ref rows are tap-major: rows [t*out_total:(t+1)*out_total] hold
    #   [[w_l2l_t, w_g2l_t], [w_l2g_t, 0]]  of shape (out_total, in_total),
    # so one matmul per tap produces [y_l ; l2g] stacked along sublanes.
    y_sp = None
    for t in range(K):
        wt = ws_ref[t * out_total:(t + 1) * out_total, :].astype(f32)
        contrib = jnp.dot(wt, shift(x, t - pad), preferred_element_type=f32)
        y_sp = contrib if y_sp is None else y_sp + contrib
    # rows :out_cl  = l2l(x_l) + g2l(x_g) ;  rows out_cl: = l2g(x_l)

    # ---- packed parameter slab unpacking (static slices) --------------------
    pp = pp_ref[...].astype(f32)
    c0 = max(in_cg, 2 * ch)
    w1 = pp[0:ch, 0:in_cg]                           # (ch, in_cg)
    wf = pp[ch:3 * ch, 0:2 * ch]                     # (2ch, 2ch) block re/im order
    w2 = pp[3 * ch:3 * ch + out_cg, 0:ch]            # (out_cg, ch)
    g1 = pp[0:ch, c0:c0 + 1]                         # (ch, 1)
    b1 = pp[0:ch, c0 + 1:c0 + 2]
    g2 = pp[0:2 * ch, c0 + 2:c0 + 3]                 # (2ch, 1)
    b2 = pp[0:2 * ch, c0 + 3:c0 + 4]

    def bn_relu(v, gamma, beta):
        # training-mode BatchNorm1d (biased variance over batch & length) + ReLU
        n = v.shape[1]
        mean = jnp.sum(v, axis=1, keepdims=True) / n
        d = v - mean
        var = jnp.sum(d * d, axis=1, keepdims=True) / n
        return jnp.maximum(d * lax.rsqrt(var + _BN_EPS) * gamma + beta, 0.0)

    # ---- SpectralTransformer.conv1: 1x1 conv -> BN -> ReLU -------------------
    xg = x[in_cl:]                                   # (in_cg, B*L)
    h = bn_relu(jnp.dot(w1, xg, preferred_element_type=f32), g1, b1)  # (ch, B*L)

    # ---- FourierUnit ---------------------------------------------------------
    # normalized rfft, per batch, fused Re/Im:  (ch, L) @ (L, 2F)
    dftf = dftf_ref[...]                             # (L, 2F) = [ccos | -csin]
    re_parts, im_parts = [], []
    for b in range(B):
        rf = jnp.dot(h[:, b * L:(b + 1) * L], dftf,
                     preferred_element_type=f32)     # (ch, 2F)
        re_parts.append(rf[:, :F])
        im_parts.append(rf[:, F:])
    z = jnp.concatenate([jnp.concatenate(re_parts, axis=1),
                         jnp.concatenate(im_parts, axis=1)], axis=0)  # (2ch, B*F)

    # 1x1 conv over block-ordered [re..., im...] channels -> BN -> ReLU
    s = bn_relu(jnp.dot(wf, z, preferred_element_type=f32), g2, b2)   # (2ch, B*F)

    # normalized irfft, per batch, fused Re/Im:  (ch, 2F) @ (2F, L)
    dfti = dfti_ref[...]                             # (2F, L) = [iccos ; -icsin]
    fu_parts = []
    for b in range(B):
        s_b = jnp.concatenate([s[:ch, b * F:(b + 1) * F],
                               s[ch:, b * F:(b + 1) * F]], axis=1)    # (ch, 2F)
        fu_parts.append(jnp.dot(s_b, dfti, preferred_element_type=f32))
    fu = jnp.concatenate(fu_parts, axis=1)           # (ch, B*L)

    # ---- SpectralTransformer.conv2(x + fu(x)), added into the l2g rows ------
    g2g = jnp.dot(w2, h + fu, preferred_element_type=f32)             # (out_cg, B*L)
    y = y_sp + jnp.concatenate(
        [jnp.zeros((out_cl, bl), f32), g2g], axis=0)

    # single full-slab store: rows :out_cl = y_l, rows out_cl: = y_g
    o_ref[...] = y.astype(o_ref.dtype)


# -------------------------------- wrapper ------------------------------------

def _dft_matrices(L):
    """Fused matrices realizing torch.rfft / torch.irfft with normalized=True."""
    F = L // 2 + 1
    ll = jnp.arange(L, dtype=jnp.float32)[:, None]
    ff = jnp.arange(F, dtype=jnp.float32)[None, :]
    ang = 2.0 * jnp.pi * ll * ff / L
    scale = 1.0 / jnp.sqrt(jnp.float32(L))
    ccos = jnp.cos(ang) * scale                      # (L, F): Re = x @ ccos
    csin = jnp.sin(ang) * scale                      # (L, F): Im = x @ (-csin)
    wts = jnp.full((F,), 2.0, jnp.float32).at[0].set(1.0)
    if L % 2 == 0:
        wts = wts.at[F - 1].set(1.0)
    iccos = jnp.transpose(ccos * wts[None, :])       # (F, L)
    icsin = jnp.transpose(csin * wts[None, :])       # (F, L)
    dft_fwd = jnp.concatenate([ccos, -csin], axis=1)         # (L, 2F)
    dft_inv = jnp.concatenate([iccos, -icsin], axis=0)       # (2F, L)
    return dft_fwd, dft_inv


@functools.partial(jax.jit, static_argnames=("pad",))
def ffc_forward(x_l, x_g, p, pad):
    """FFC.forward for ratio_gin = ratio_gout = 0.5 (both branches active)."""
    B, in_cl, L = x_l.shape
    in_cg = x_g.shape[1]
    out_cl, _, K = p["w_l2l"].shape
    out_cg = p["w_l2g"].shape[0]
    ch = p["w_conv1"].shape[0]
    F = L // 2 + 1
    dt = x_l.dtype
    if L + 2 * pad - K + 1 != L:
        # TODO(synk): stride=2 / dilation / pad combos changing the output
        # length are not supported by this fused kernel.
        raise NotImplementedError("fused FFC kernel assumes stride=1, l_out == L")

    in_total = in_cl + in_cg
    out_total = out_cl + out_cg

    # One combined lane-dense (channels, B*L) activation slab (layout plumbing
    # under jit; constant-folds with the surrounding transposes).
    x_in = jnp.concatenate(
        [jnp.transpose(x_l, (1, 0, 2)).reshape(in_cl, B * L),
         jnp.transpose(x_g, (1, 0, 2)).reshape(in_cg, B * L)], axis=0)

    # Spatial conv weights, tap-major rows: one (out_total, in_total) block per
    # tap so the kernel accumulates K shifted matmuls (no im2col concat).
    taps = []
    for t in range(K):
        top = jnp.concatenate([p["w_l2l"][:, :, t], p["w_g2l"][:, :, t]], axis=1)
        bot = jnp.concatenate([p["w_l2g"][:, :, t],
                               jnp.zeros((out_cg, in_cg), jnp.float32)], axis=1)
        taps.append(jnp.concatenate([top, bot], axis=0))
    w_spatial = jnp.concatenate(taps, axis=0)        # (K*out_total, in_total)

    # Plain (L, 2F)/(2F, L) DFT constants (compile-time constants under jit).
    dft_fwd, dft_inv = _dft_matrices(L)

    # FourierUnit conv/BN params: PyTorch interleaved [c0_re, c0_im, ...] channel
    # order -> block order [re..., im...] so the 1x1 conv is one matmul.
    perm = jnp.array(list(range(0, 2 * ch, 2)) + list(range(1, 2 * ch, 2)),
                     dtype=jnp.int32)
    wf_blk = p["w_fu"][perm][:, perm]

    # Pack all small parameters into ONE slab (fewer input DMAs).
    c0 = max(in_cg, 2 * ch)
    rows = 3 * ch + out_cg
    cols = c0 + 4
    pp = jnp.zeros((rows, cols), jnp.float32)
    pp = pp.at[0:ch, 0:in_cg].set(p["w_conv1"])
    pp = pp.at[ch:3 * ch, 0:2 * ch].set(wf_blk)
    pp = pp.at[3 * ch:3 * ch + out_cg, 0:ch].set(p["w_conv2"])
    pp = pp.at[0:ch, c0].set(p["gamma1"])
    pp = pp.at[0:ch, c0 + 1].set(p["beta1"])
    pp = pp.at[0:2 * ch, c0 + 2].set(p["gamma2"][perm])
    pp = pp.at[0:2 * ch, c0 + 3].set(p["beta2"][perm])

    kern = functools.partial(_ffc_fused_kernel, K=K, pad=pad, L=L, B=B,
                             in_cl=in_cl, in_cg=in_cg, out_cl=out_cl,
                             out_cg=out_cg, ch=ch, F=F)
    vmem = pl.BlockSpec(memory_space=pltpu.MemorySpace.VMEM)
    # Single pallas_call, grid=(): the whole batch is one invocation because
    # BatchNorm1d uses full-batch training statistics (see TODOs at top).
    slab = pl.pallas_call(
        kern,
        out_shape=jax.ShapeDtypeStruct((out_total, B * L), dt),
        in_specs=[vmem] * 5,
        out_specs=vmem,
        compiler_params=pltpu.CompilerParams(
            vmem_limit_bytes=32 * 1024 * 1024),
    )(x_in, w_spatial, pp, dft_fwd, dft_inv)

    y_l = jnp.transpose(slab[:out_cl].reshape(out_cl, B, L), (1, 0, 2))
    y_g = jnp.transpose(slab[out_cl:].reshape(out_cg, B, L), (1, 0, 2))
    return y_l, y_g


# --------------------------- pure-JAX reference -----------------------------

def _ffc_reference(x_l, x_g, p, pad):
    def conv1d(x, w, padding):
        return lax.conv_general_dilated(
            x, w, window_strides=(1,), padding=[(padding, padding)],
            dimension_numbers=("NCH", "OIH", "NCH"))

    def bn_relu(x, g, b):
        m = jnp.mean(x, axis=(0, 2), keepdims=True)
        v = jnp.mean((x - m) ** 2, axis=(0, 2), keepdims=True)
        y = (x - m) / jnp.sqrt(v + _BN_EPS) * g[None, :, None] + b[None, :, None]
        return jnp.maximum(y, 0.0)

    y_l = conv1d(x_l, p["w_l2l"], pad) + conv1d(x_g, p["w_g2l"], pad)

    h = bn_relu(conv1d(x_g, p["w_conv1"][:, :, None], 0), p["gamma1"], p["beta1"])
    B, C, L = h.shape
    ff = jnp.fft.rfft(h, axis=-1, norm="ortho")
    stacked = jnp.stack([ff.real, ff.imag], axis=2).reshape(B, 2 * C, -1)
    s = jnp.einsum("oi,bif->bof", p["w_fu"], stacked)
    s = bn_relu(s, p["gamma2"], p["beta2"])
    s = s.reshape(B, C, 2, -1)
    fu = jnp.fft.irfft(s[:, :, 0, :] + 1j * s[:, :, 1, :], n=L, axis=-1, norm="ortho")
    g2g = jnp.einsum("oc,bcl->bol", p["w_conv2"], h + fu)
    y_g = g2g + conv1d(x_l, p["w_l2g"], pad)
    return y_l, y_g


# --------------------------------- main --------------------------------------

if __name__ == "__main__":
    in_channels, out_channels, K, pad = 8, 8, 3, 1
    ratio_gin = ratio_gout = 0.5
    B, L = 2, 16

    in_cg = int(in_channels * ratio_gin)
    in_cl = in_channels - in_cg
    out_cg = int(out_channels * ratio_gout)
    out_cl = out_channels - out_cg
    ch = out_cg // 2                      # SpectralTransformer.conv1 output channels

    key = jax.random.PRNGKey(0)
    ks = jax.random.split(key, 12)
    p = {
        "w_l2l": 0.1 * jax.random.normal(ks[0], (out_cl, in_cl, K), jnp.float32),
        "w_l2g": 0.1 * jax.random.normal(ks[1], (out_cg, in_cl, K), jnp.float32),
        "w_g2l": 0.1 * jax.random.normal(ks[2], (out_cl, in_cg, K), jnp.float32),
        "w_conv1": 0.1 * jax.random.normal(ks[3], (ch, in_cg), jnp.float32),
        "gamma1": 1.0 + 0.1 * jax.random.normal(ks[4], (ch,), jnp.float32),
        "beta1": 0.1 * jax.random.normal(ks[5], (ch,), jnp.float32),
        "w_fu": 0.1 * jax.random.normal(ks[6], (2 * ch, 2 * ch), jnp.float32),
        "gamma2": 1.0 + 0.1 * jax.random.normal(ks[7], (2 * ch,), jnp.float32),
        "beta2": 0.1 * jax.random.normal(ks[8], (2 * ch,), jnp.float32),
        "w_conv2": 0.1 * jax.random.normal(ks[9], (out_cg, ch), jnp.float32),
    }
    x_l = jax.random.normal(ks[10], (B, in_cl, L), jnp.float32)
    x_g = jax.random.normal(ks[11], (B, in_cg, L), jnp.float32)

    y_l, y_g = jax.block_until_ready(ffc_forward(x_l, x_g, p, pad=pad))

    # Reference computed at float32 matmul precision; the kernel runs at default
    # MXU precision, so tolerance is a few e-2 — algorithmic errors would be O(1).
    # TODO(synk): for long L consider float32/bf16x3 precision on the DFT dots.
    with jax.default_matmul_precision("float32"):
        r_l, r_g = jax.block_until_ready(_ffc_reference(x_l, x_g, p, pad))

    assert y_l.shape == (B, out_cl, L) and y_g.shape == (B, out_cg, L)
    assert jnp.allclose(y_l, r_l, atol=5e-2, rtol=5e-2), \
        float(jnp.max(jnp.abs(y_l - r_l)))
    assert jnp.allclose(y_g, r_g, atol=5e-2, rtol=5e-2), \
        float(jnp.max(jnp.abs(y_g - r_g)))

    print("KERNEL_OK")
</pallas_src>

<mosaic_0001>
module attributes {stable_mosaic.version = 11 : i64} {
  func.func @_ffc_fused_kernel(%arg0: memref<8x32xf32, #tpu.memory_space<vmem>>, %arg1: memref<24x8xf32, #tpu.memory_space<vmem>>, %arg2: memref<10x8xf32, #tpu.memory_space<vmem>>, %arg3: memref<16x18xf32, #tpu.memory_space<vmem>>, %arg4: memref<18x16xf32, #tpu.memory_space<vmem>>, %arg5: memref<8x32xf32, #tpu.memory_space<vmem>>) attributes {dimension_semantics = [], scalar_prefetch = 0 : i64, scratch_operands = 0 : i64, tpu.core_type = #tpu.core_type<tc>} {
    %c0 = arith.constant 0 : index
    %c0_0 = arith.constant 0 : index
    %0 = vector.load %arg0[%c0, %c0_0] : memref<8x32xf32, #tpu.memory_space<vmem>>, vector<8x32xf32>
    %1 = tpu.iota {dimensions = array<i32: 1>} : vector<8x32xi32>
    %c16_i32 = arith.constant 16 : i32
    %c0_i32 = arith.constant 0 : i32
    %2 = arith.cmpi eq, %c16_i32, %c0_i32 : i32
    %c1_i32 = arith.constant 1 : i32
    %3 = arith.select %2, %c1_i32, %c16_i32 : i32
    %4 = vector.broadcast %3 : i32 to vector<8x32xi32>
    %5 = arith.remsi %1, %4 : vector<8x32xi32>
    %c0_i32_1 = arith.constant 0 : i32
    %6 = vector.broadcast %c0_i32_1 : i32 to vector<8x32xi32>
    %7 = arith.cmpi ne, %5, %6 : vector<8x32xi32>
    %c0_i32_2 = arith.constant 0 : i32
    %8 = vector.broadcast %c0_i32_2 : i32 to vector<8x32xi32>
    %9 = arith.cmpi slt, %5, %8 : vector<8x32xi32>
    %c0_i32_3 = arith.constant 0 : i32
    %10 = arith.cmpi slt, %3, %c0_i32_3 : i32
    %11 = vector.broadcast %10 : i1 to vector<8x32xi1>
    %12 = vector.broadcast %11 : vector<8x32xi1> to vector<8x32xi1>
    %13 = arith.xori %9, %12 : vector<8x32xi1>
    %14 = arith.andi %13, %7 : vector<8x32xi1>
    %15 = vector.broadcast %3 : i32 to vector<8x32xi32>
    %16 = arith.addi %5, %15 : vector<8x32xi32>
    %17 = arith.select %14, %16, %5 : vector<8x32xi1>, vector<8x32xi32>
    %c0_4 = arith.constant 0 : index
    %c0_5 = arith.constant 0 : index
    %18 = vector.load %arg1[%c0_4, %c0_5] : memref<24x8xf32, #tpu.memory_space<vmem>>, vector<8x8xf32>
    %cst = arith.constant 0.000000e+00 : f32
    %19 = vector.broadcast %cst : f32 to vector<8x1xf32>
    %20 = vector.extract_strided_slice %0 {offsets = [0, 0], sizes = [8, 31], strides = [1, 1]} : vector<8x32xf32> to vector<8x31xf32>
    %21 = tpu.concatenate %19, %20 in 1 : vector<8x1xf32>, vector<8x31xf32> -> vector<8x32xf32>
    %c1_i32_6 = arith.constant 1 : i32
    %22 = vector.broadcast %c1_i32_6 : i32 to vector<8x32xi32>
    %23 = arith.cmpi sge, %17, %22 : vector<8x32xi32>
    %cst_7 = arith.constant 0.000000e+00 : f32
    %24 = vector.broadcast %cst_7 : f32 to vector<8x32xf32>
    %25 = arith.select %23, %21, %24 : vector<8x32xi1>, vector<8x32xf32>
    %cst_8 = arith.constant dense<0.000000e+00> : vector<8x32xf32>
    %26 = tpu.matmul %18, %25, %cst_8 {dimension_numbers = #tpu.dot_dimension_numbers<[1], [0], [0], [1], [0, 0, 1, 1], [], []>} : vector<8x8xf32>, vector<8x32xf32>, vector<8x32xf32> -> vector<8x32xf32>
    %c8 = arith.constant 8 : index
    %c0_9 = arith.constant 0 : index
    %27 = vector.load %arg1[%c8, %c0_9] : memref<24x8xf32, #tpu.memory_space<vmem>>, vector<8x8xf32>
    %cst_10 = arith.constant dense<0.000000e+00> : vector<8x32xf32>
    %28 = tpu.matmul %27, %0, %cst_10 {dimension_numbers = #tpu.dot_dimension_numbers<[1], [0], [0], [1], [0, 0, 1, 1], [], []>} : vector<8x8xf32>, vector<8x32xf32>, vector<8x32xf32> -> vector<8x32xf32>
    %29 = arith.addf %26, %28 : vector<8x32xf32>
    %c16 = arith.constant 16 : index
    %c0_11 = arith.constant 0 : index
    %30 = vector.load %arg1[%c16, %c0_11] : memref<24x8xf32, #tpu.memory_space<vmem>>, vector<8x8xf32>
    %31 = vector.extract_strided_slice %0 {offsets = [0, 1], sizes = [8, 31], strides = [1, 1]} : vector<8x32xf32> to vector<8x31xf32>
    %cst_12 = arith.constant 0.000000e+00 : f32
    %32 = vector.broadcast %cst_12 : f32 to vector<8x1xf32>
    %33 = tpu.concatenate %31, %32 in 1 : vector<8x31xf32>, vector<8x1xf32> -> vector<8x32xf32>
    %c15_i32 = arith.constant 15 : i32
    %34 = vector.broadcast %c15_i32 : i32 to vector<8x32xi32>
    %35 = arith.cmpi slt, %17, %34 : vector<8x32xi32>
    %cst_13 = arith.constant 0.000000e+00 : f32
    %36 = vector.broadcast %cst_13 : f32 to vector<8x32xf32>
    %37 = arith.select %35, %33, %36 : vector<8x32xi1>, vector<8x32xf32>
    %cst_14 = arith.constant dense<0.000000e+00> : vector<8x32xf32>
    %38 = tpu.matmul %30, %37, %cst_14 {dimension_numbers = #tpu.dot_dimension_numbers<[1], [0], [0], [1], [0, 0, 1, 1], [], []>} : vector<8x8xf32>, vector<8x32xf32>, vector<8x32xf32> -> vector<8x32xf32>
    %39 = arith.addf %29, %38 : vector<8x32xf32>
    %c0_15 = arith.constant 0 : index
    %c0_16 = arith.constant 0 : index
    %40 = vector.load %arg2[%c0_15, %c0_16] : memref<10x8xf32, #tpu.memory_space<vmem>>, vector<10x8xf32>
    %41 = vector.extract_strided_slice %40 {offsets = [0, 0], sizes = [2, 4], strides = [1, 1]} : vector<10x8xf32> to vector<2x4xf32>
    %42 = vector.extract_strided_slice %40 {offsets = [2, 0], sizes = [4, 4], strides = [1, 1]} : vector<10x8xf32> to vector<4x4xf32>
    %43 = vector.extract_strided_slice %40 {offsets = [6, 0], sizes = [4, 2], strides = [1, 1]} : vector<10x8xf32> to vector<4x2xf32>
    %44 = vector.extract_strided_slice %40 {offsets = [0, 4], sizes = [2, 1], strides = [1, 1]} : vector<10x8xf32> to vector<2x1xf32>
    %45 = vector.extract_strided_slice %40 {offsets = [0, 5], sizes = [2, 1], strides = [1, 1]} : vector<10x8xf32> to vector<2x1xf32>
    %46 = vector.extract_strided_slice %40 {offsets = [0, 6], sizes = [4, 1], strides = [1, 1]} : vector<10x8xf32> to vector<4x1xf32>
    %47 = vector.extract_strided_slice %40 {offsets = [0, 7], sizes = [4, 1], strides = [1, 1]} : vector<10x8xf32> to vector<4x1xf32>
    %48 = vector.extract_strided_slice %0 {offsets = [4, 0], sizes = [4, 32], strides = [1, 1]} : vector<8x32xf32> to vector<4x32xf32>
    %cst_17 = arith.constant dense<0.000000e+00> : vector<2x32xf32>
    %49 = tpu.matmul %41, %48, %cst_17 {dimension_numbers = #tpu.dot_dimension_numbers<[1], [0], [0], [1], [0, 0, 1, 1], [], []>} : vector<2x4xf32>, vector<4x32xf32>, vector<2x32xf32> -> vector<2x32xf32>
    %cst_18 = arith.constant dense<0.000000e+00> : vector<2xf32>
    %50 = vector.multi_reduction <add>, %49, %cst_18 [1] : vector<2x32xf32> to vector<2xf32>
    %51 = vector.shape_cast %50 : vector<2xf32> to vector<2x1xf32>
    %cst_19 = arith.constant 3.200000e+01 : f32
    %52 = vector.broadcast %cst_19 : f32 to vector<2x1xf32>
    %53 = arith.divf %51, %52 : vector<2x1xf32>
    %54 = vector.broadcast %53 : vector<2x1xf32> to vector<2x32xf32>
    %55 = arith.subf %49, %54 : vector<2x32xf32>
    %56 = arith.mulf %55, %55 : vector<2x32xf32>
    %cst_20 = arith.constant dense<0.000000e+00> : vector<2xf32>
    %57 = vector.multi_reduction <add>, %56, %cst_20 [1] : vector<2x32xf32> to vector<2xf32>
    %58 = vector.shape_cast %57 : vector<2xf32> to vector<2x1xf32>
    %cst_21 = arith.constant 3.200000e+01 : f32
    %59 = vector.broadcast %cst_21 : f32 to vector<2x1xf32>
    %60 = arith.divf %58, %59 : vector<2x1xf32>
    %cst_22 = arith.constant 9.99999974E-6 : f32
    %61 = vector.broadcast %cst_22 : f32 to vector<2x1xf32>
    %62 = arith.addf %60, %61 : vector<2x1xf32>
    %63 = math.rsqrt %62 : vector<2x1xf32>
    %64 = vector.broadcast %63 : vector<2x1xf32> to vector<2x32xf32>
    %65 = arith.mulf %55, %64 : vector<2x32xf32>
    %66 = vector.broadcast %44 : vector<2x1xf32> to vector<2x32xf32>
    %67 = arith.mulf %65, %66 : vector<2x32xf32>
    %68 = vector.broadcast %45 : vector<2x1xf32> to vector<2x32xf32>
    %69 = arith.addf %67, %68 : vector<2x32xf32>
    %cst_23 = arith.constant 0.000000e+00 : f32
    %70 = vector.broadcast %cst_23 : f32 to vector<2x32xf32>
    %71 = arith.maximumf %69, %70 : vector<2x32xf32>
    %c0_24 = arith.constant 0 : index
    %c0_25 = arith.constant 0 : index
    %72 = vector.load %arg3[%c0_24, %c0_25] : memref<16x18xf32, #tpu.memory_space<vmem>>, vector<16x18xf32>
    %73 = vector.extract_strided_slice %71 {offsets = [0, 0], sizes = [2, 16], strides = [1, 1]} : vector<2x32xf32> to vector<2x16xf32>
    %cst_26 = arith.constant dense<0.000000e+00> : vector<2x18xf32>
    %74 = tpu.matmul %73, %72, %cst_26 {dimension_numbers = #tpu.dot_dimension_numbers<[1], [0], [0], [1], [0, 0, 1, 1], [], []>} : vector<2x16xf32>, vector<16x18xf32>, vector<2x18xf32> -> vector<2x18xf32>
    %75 = vector.extract_strided_slice %74 {offsets = [0, 0], sizes = [2, 9], strides = [1, 1]} : vector<2x18xf32> to vector<2x9xf32>
    %76 = vector.extract_strided_slice %74 {offsets = [0, 9], sizes = [2, 9], strides = [1, 1]} : vector<2x18xf32> to vector<2x9xf32>
    %77 = vector.extract_strided_slice %71 {offsets = [0, 16], sizes = [2, 16], strides = [1, 1]} : vector<2x32xf32> to vector<2x16xf32>
    %cst_27 = arith.constant dense<0.000000e+00> : vector<2x18xf32>
    %78 = tpu.matmul %77, %72, %cst_27 {dimension_numbers = #tpu.dot_dimension_numbers<[1], [0], [0], [1], [0, 0, 1, 1], [], []>} : vector<2x16xf32>, vector<16x18xf32>, vector<2x18xf32> -> vector<2x18xf32>
    %79 = vector.extract_strided_slice %78 {offsets = [0, 0], sizes = [2, 9], strides = [1, 1]} : vector<2x18xf32> to vector<2x9xf32>
    %80 = vector.extract_strided_slice %78 {offsets = [0, 9], sizes = [2, 9], strides = [1, 1]} : vector<2x18xf32> to vector<2x9xf32>
    %81 = tpu.concatenate %75, %79 in 1 : vector<2x9xf32>, vector<2x9xf32> -> vector<2x18xf32>
    %82 = tpu.concatenate %76, %80 in 1 : vector<2x9xf32>, vector<2x9xf32> -> vector<2x18xf32>
    %83 = tpu.concatenate %81, %82 in 0 : vector<2x18xf32>, vector<2x18xf32> -> vector<4x18xf32>
    %cst_28 = arith.constant dense<0.000000e+00> : vector<4x18xf32>
    %84 = tpu.matmul %42, %83, %cst_28 {dimension_numbers = #tpu.dot_dimension_numbers<[1], [0], [0], [1], [0, 0, 1, 1], [], []>} : vector<4x4xf32>, vector<4x18xf32>, vector<4x18xf32> -> vector<4x18xf32>
    %cst_29 = arith.constant dense<0.000000e+00> : vector<4xf32>
    %85 = vector.multi_reduction <add>, %84, %cst_29 [1] : vector<4x18xf32> to vector<4xf32>
    %86 = vector.shape_cast %85 : vector<4xf32> to vector<4x1xf32>
    %cst_30 = arith.constant 1.800000e+01 : f32
    %87 = vector.broadcast %cst_30 : f32 to vector<4x1xf32>
    %88 = arith.divf %86, %87 : vector<4x1xf32>
    %89 = vector.broadcast %88 : vector<4x1xf32> to vector<4x18xf32>
    %90 = arith.subf %84, %89 : vector<4x18xf32>
    %91 = arith.mulf %90, %90 : vector<4x18xf32>
    %cst_31 = arith.constant dense<0.000000e+00> : vector<4xf32>
    %92 = vector.multi_reduction <add>, %91, %cst_31 [1] : vector<4x18xf32> to vector<4xf32>
    %93 = vector.shape_cast %92 : vector<4xf32> to vector<4x1xf32>
    %cst_32 = arith.constant 1.800000e+01 : f32
    %94 = vector.broadcast %cst_32 : f32 to vector<4x1xf32>
    %95 = arith.divf %93, %94 : vector<4x1xf32>
    %cst_33 = arith.constant 9.99999974E-6 : f32
    %96 = vector.broadcast %cst_33 : f32 to vector<4x1xf32>
    %97 = arith.addf %95, %96 : vector<4x1xf32>
    %98 = math.rsqrt %97 : vector<4x1xf32>
    %99 = vector.broadcast %98 : vector<4x1xf32> to vector<4x18xf32>
    %100 = arith.mulf %90, %99 : vector<4x18xf32>
    %101 = vector.broadcast %46 : vector<4x1xf32> to vector<4x18xf32>
    %102 = arith.mulf %100, %101 : vector<4x18xf32>
    %103 = vector.broadcast %47 : vector<4x1xf32> to vector<4x18xf32>
    %104 = arith.addf %102, %103 : vector<4x18xf32>
    %cst_34 = arith.constant 0.000000e+00 : f32
    %105 = vector.broadcast %cst_34 : f32 to vector<4x18xf32>
    %106 = arith.maximumf %104, %105 : vector<4x18xf32>
    %c0_35 = arith.constant 0 : index
    %c0_36 = arith.constant 0 : index
    %107 = vector.load %arg4[%c0_35, %c0_36] : memref<18x16xf32, #tpu.memory_space<vmem>>, vector<18x16xf32>
    %108 = vector.extract_strided_slice %106 {offsets = [0, 0], sizes = [2, 9], strides = [1, 1]} : vector<4x18xf32> to vector<2x9xf32>
    %109 = vector.extract_strided_slice %106 {offsets = [2, 0], sizes = [2, 9], strides = [1, 1]} : vector<4x18xf32> to vector<2x9xf32>
    %110 = tpu.concatenate %108, %109 in 1 : vector<2x9xf32>, vector<2x9xf32> -> vector<2x18xf32>
    %cst_37 = arith.constant dense<0.000000e+00> : vector<2x16xf32>
    %111 = tpu.matmul %110, %107, %cst_37 {dimension_numbers = #tpu.dot_dimension_numbers<[1], [0], [0], [1], [0, 0, 1, 1], [], []>} : vector<2x18xf32>, vector<18x16xf32>, vector<2x16xf32> -> vector<2x16xf32>
    %112 = vector.extract_strided_slice %106 {offsets = [0, 9], sizes = [2, 9], strides = [1, 1]} : vector<4x18xf32> to vector<2x9xf32>
    %113 = vector.extract_strided_slice %106 {offsets = [2, 9], sizes = [2, 9], strides = [1, 1]} : vector<4x18xf32> to vector<2x9xf32>
    %114 = tpu.concatenate %112, %113 in 1 : vector<2x9xf32>, vector<2x9xf32> -> vector<2x18xf32>
    %cst_38 = arith.constant dense<0.000000e+00> : vector<2x16xf32>
    %115 = tpu.matmul %114, %107, %cst_38 {dimension_numbers = #tpu.dot_dimension_numbers<[1], [0], [0], [1], [0, 0, 1, 1], [], []>} : vector<2x18xf32>, vector<18x16xf32>, vector<2x16xf32> -> vector<2x16xf32>
    %116 = tpu.concatenate %111, %115 in 1 : vector<2x16xf32>, vector<2x16xf32> -> vector<2x32xf32>
    %117 = arith.addf %71, %116 : vector<2x32xf32>
    %cst_39 = arith.constant dense<0.000000e+00> : vector<4x32xf32>
    %118 = tpu.matmul %43, %117, %cst_39 {dimension_numbers = #tpu.dot_dimension_numbers<[1], [0], [0], [1], [0, 0, 1, 1], [], []>} : vector<4x2xf32>, vector<2x32xf32>, vector<4x32xf32> -> vector<4x32xf32>
    %cst_40 = arith.constant 0.000000e+00 : f32
    %119 = vector.broadcast %cst_40 : f32 to vector<4x32xf32>
    %120 = tpu.concatenate %119, %118 in 0 : vector<4x32xf32>, vector<4x32xf32> -> vector<8x32xf32>
    %121 = arith.addf %39, %120 : vector<8x32xf32>
    %c0_41 = arith.constant 0 : index
    %c0_42 = arith.constant 0 : index
    %122 = vector.load %arg5[%c0_41, %c0_42] : memref<8x32xf32, #tpu.memory_space<vmem>>, vector<8x32xf32>
    tpu.vector_store %arg5[%c0_41, %c0_42], %121 {strides = array<i32>} : memref<8x32xf32, #tpu.memory_space<vmem>>, vector<8x32xf32>,
    return
  }
}

</mosaic_0001>

<llo_original>
// kernel: ffc_forward.1
$region0: #{ffc_forward.1}
  #allocation0 [shape = 'u32[]', space=smem, size = 0x4, offset = 0x4, fixed_abs, tag = 'smem constant byte address 0x4 - core index']
  #allocation1 [shape = 'u32[72,128]{1,0:T(1,128)}', space=vmem, size = 0x9000, scoped, tag = 'internal scratch']
  %s0 = inlined_call_operand.vmem [shape: f32[8,32], index: 0, kind: input, shape index: {}]
  %s1 = inlined_call_operand.vmem [shape: f32[24,8], index: 1, kind: input, shape index: {}]
  %s2 = inlined_call_operand.vmem [shape: f32[10,8], index: 2, kind: input, shape index: {}]
  %s3 = inlined_call_operand.vmem [shape: f32[16,18], index: 3, kind: input, shape index: {}]
  %s4 = inlined_call_operand.vmem [shape: f32[18,16], index: 4, kind: input, shape index: {}]
  %s5 = inlined_call_operand.vmem [shape: f32[8,32], index: 5, kind: output, shape index: {}]
  %s6 = sld [smem:[#allocation0]]
  $region30: #{ffc_forward.1} parent=0
    _
  %s8 = ssub.s32 1, %s6
  %s9 = scalar_select 0, %s8, %s6
  // Predicated region
  $region2: #{ffc_forward.1} parent=0 // pred_check
    _
  $region3: #{ffc_forward.1} parent=0 // pred_check_branch
    %11 = sbr.rel (0) target = $region5
  $region4: #{ffc_forward.1} parent=0 // pred_region
    _
  $region5: #{ffc_forward.1} parent=0 // pred_fallthru
    _
  // Predicated region
  $region6: #{ffc_forward.1} parent=0 // pred_check
    _
  $region7: #{ffc_forward.1} parent=0 // pred_check_branch
    %13 = sbr.rel (0) target = $region9
  $region8: #{ffc_forward.1} parent=0 // pred_region
    _
  $region9: #{ffc_forward.1} parent=0 // pred_fallthru
    _
  // Predicated region
  $region10: #{ffc_forward.1} parent=0 // pred_check
    _
  $region11: #{ffc_forward.1} parent=0 // pred_check_branch
    %15 = sbr.rel (0) target = $region13
  $region12: #{ffc_forward.1} parent=0 // pred_region
    _
  $region13: #{ffc_forward.1} parent=0 // pred_fallthru
    _
  // Predicated region
  $region14: #{ffc_forward.1} parent=0 // pred_check
    _
  $region15: #{ffc_forward.1} parent=0 // pred_check_branch
    %17 = sbr.rel (0) target = $region17
  $region16: #{ffc_forward.1} parent=0 // pred_region
    _
  $region17: #{ffc_forward.1} parent=0 // pred_fallthru
    _
  // Predicated region
  $region18: #{ffc_forward.1} parent=0 // pred_check
    _
  $region19: #{ffc_forward.1} parent=0 // pred_check_branch
    %19 = sbr.rel (0) target = $region21
  $region20: #{ffc_forward.1} parent=0 // pred_region
    _
  $region21: #{ffc_forward.1} parent=0 // pred_fallthru
    _
  %v20 = vld [vmem:[%s0] sm:$0xff]
  %v21 = vlaneseq
  %v22 = vand.u32 %v21, 127
  %vm23 = vcmp.lt.s32.totalorder %v22, 0
  %v24 = vsub.s32 0, %v22
  %v25 = vsel %vm23, %v24, %v22
  %v26 = vshrl.u32 %v25, 4
  %v27 = vand.u32 %v25, 15
  %v28 = vsub.s32 0, %v27
  %v29 = vsel %vm23, %v28, %v27
  %vm30 = vcmp.ne.s32.totalorder %v29, 0
  %vm31 = vcmp.lt.s32.totalorder %v29, 0
  %vm32 = vmand %vm31, %vm30
  %v33 = vadd.s32 %v29, 16
  %v34 = vsel %vm32, %v33, %v29
  %v35 = vld [vmem:[%s1] sm:$0xff]
  %37 = vrot.lane.b32.xlu0 %v20, 1
  %v38 = vpop.permute.xlu0 %37
  %vm40 = vcmask 7168
  %v41 = vsel %vm40, 0.0, %v38
  %vm42 = vcmp.ge.s32.totalorder %v34, 1
  %v43 = vsel %vm42, %v41, 0.0
  %v44 = vld [vmem:[%s1 + $0x8] sm:$0xff]
  %vm45 = vcmask 64512
  %v47 = vsel %vm45, %v44, 0
  %49 = vmatpush.msra.mxu0 0.0
  %50 = vmatpush.msra.mxu0 0.0
  %51 = vmatpush.msra.mxu0 0.0
  %52 = vmatpush.msra.mxu0 0.0
  %53 = vmatpush.msra.mxu0 0.0
  %54 = vmatpush.msra.mxu0 0.0
  %55 = vmatpush.msra.mxu0 0.0
  %56 = vmatpush.msra.mxu0 0.0
  %57 = vmatpush.msra.mxu0 0.0
  %58 = vmatpush.msra.mxu0 0.0
  %59 = vmatpush.msra.mxu0 0.0
  %60 = vmatpush.msra.mxu0 0.0
  %61 = vmatpush.msra.mxu0 0.0
  %62 = vmatpush.msra.mxu0 0.0
  %63 = vmatpush.msra.mxu0 0.0
  %64 = vmatpush.msra.mxu0 %v20
  %65 = vmatmul.f32.gmra.mxu0 %v47
  %v66 = vpop.f32.mrf.mxu0
  %v67 = vadd.f32 0.0, %v66
  %68 = vdwg.mxu0
  %v70 = vsel %vm45, %v35, 0
  %72 = vmatpush.msra.mxu0 0.0
  %73 = vmatpush.msra.mxu0 0.0
  %74 = vmatpush.msra.mxu0 0.0
  %75 = vmatpush.msra.mxu0 0.0
  %76 = vmatpush.msra.mxu0 0.0
  %77 = vmatpush.msra.mxu0 0.0
  %78 = vmatpush.msra.mxu0 0.0
  %79 = vmatpush.msra.mxu0 0.0
  %80 = vmatpush.msra.mxu0 0.0
  %81 = vmatpush.msra.mxu0 0.0
  %82 = vmatpush.msra.mxu0 0.0
  %83 = vmatpush.msra.mxu0 0.0
  %84 = vmatpush.msra.mxu0 0.0
  %85 = vmatpush.msra.mxu0 0.0
  %86 = vmatpush.msra.mxu0 0.0
  %87 = vmatpush.msra.mxu0 %v43
  %88 = vmatmul.f32.gmra.mxu0 %v70
  %v89 = vpop.f32.mrf.mxu0
  %v90 = vadd.f32 %v67, %v89
  %91 = vdwg.mxu0
  %v92 = vld [vmem:[%s1 + $0x10] sm:$0xff]
  %93 = vrot.lane.b32.xlu0 %v20, 127
  %v94 = vpop.permute.xlu0 %93
  %vm96 = vcmask 252928
  %v97 = vsel %vm96, %v94, 0.0
  %vm98 = vcmp.lt.s32.totalorder %v34, 15
  %v99 = vsel %vm98, %v97, 0.0
  %v101 = vsel %vm45, %v92, 0
  %103 = vmatpush.msra.mxu0 0.0
  %104 = vmatpush.msra.mxu0 0.0
  %105 = vmatpush.msra.mxu0 0.0
  %106 = vmatpush.msra.mxu0 0.0
  %107 = vmatpush.msra.mxu0 0.0
  %108 = vmatpush.msra.mxu0 0.0
  %109 = vmatpush.msra.mxu0 0.0
  %110 = vmatpush.msra.mxu0 0.0
  %111 = vmatpush.msra.mxu0 0.0
  %112 = vmatpush.msra.mxu0 0.0
  %113 = vmatpush.msra.mxu0 0.0
  %114 = vmatpush.msra.mxu0 0.0
  %115 = vmatpush.msra.mxu0 0.0
  %116 = vmatpush.msra.mxu0 0.0
  %117 = vmatpush.msra.mxu0 0.0
  %118 = vmatpush.msra.mxu0 %v99
  %119 = vmatmul.f32.gmra.mxu0 %v101
  %v120 = vpop.f32.mrf.mxu0
  %v121 = vadd.f32 0.0, %v120
  %122 = vdwg.mxu0
  %v123 = vadd.f32 %v90, %v121
  %v124 = vld [vmem:[%s2] sm:$0xff]
  %v125 = vld [vmem:[%s2 + $0x8] sm:$0x3]
  %v126 = vrot.slane %v20, 4
  %vm127 = vcmask 31744
  %v129 = vsel %vm127, %v124, 0
  %vm131 = vcmask 1043456
  %v132 = vsel %vm131, %v126, 0
  %134 = vmatpush.msra.mxu0 0.0
  %135 = vmatpush.msra.mxu0 0.0
  %136 = vmatpush.msra.mxu0 0.0
  %137 = vmatpush.msra.mxu0 0.0
  %138 = vmatpush.msra.mxu0 0.0
  %139 = vmatpush.msra.mxu0 0.0
  %140 = vmatpush.msra.mxu0 0.0
  %141 = vmatpush.msra.mxu0 0.0
  %142 = vmatpush.msra.mxu0 0.0
  %143 = vmatpush.msra.mxu0 0.0
  %144 = vmatpush.msra.mxu0 0.0
  %145 = vmatpush.msra.mxu0 0.0
  %146 = vmatpush.msra.mxu0 0.0
  %147 = vmatpush.msra.mxu0 0.0
  %148 = vmatpush.msra.mxu0 0.0
  %149 = vmatpush.msra.mxu0 %v132
  %150 = vmatmul.f32.gmra.mxu0 %v129
  %v151 = vpop.f32.mrf.mxu0
  %v152 = vadd.f32 0.0, %v151
  %153 = vdwg.mxu0
  %vm154 = vcmask 254976
  %v155 = vsel %vm154, %v152, 0.0
  %156 = vadd.xlane.f32.xlu0 %v155
  %v157 = vpop.xlane.xlu0 %156
  %v158 = vrcp.pop 32.0
  %v159 = vmul.f32 32.0, %v158
  %v160 = vsub.f32 1.0, %v159
  %v161 = vmul.f32 %v158, %v160
  %v162 = vadd.f32 %v158, %v161
  %vm163 = vweird.f32 %v158
  %v164 = vsel %vm163, %v158, %v162
  %v165 = vmul.f32 %v157, %v164
  %v166 = vsub.f32 %v152, %v165
  %v167 = vmul.f32 %v166, %v166
  %v168 = vsel %vm154, %v167, 0.0
  %169 = vadd.xlane.f32.xlu0 %v168
  %v170 = vpop.xlane.xlu0 %169
  %v171 = vmul.f32 %v170, %v164
  %v172 = vadd.f32 %v171, 1e-05
  %v173 = vrsqrt.pop %v172
  %v174 = vmul.f32 %v173, %v172
  %v175 = vmul.f32 %v174, %v173
  %v176 = vmul.f32 0.5, %v175
  %v177 = vsub.f32 1.5, %v176
  %v178 = vmul.f32 %v173, %v177
  %vm179 = vweird.f32 %v172
  %vm180 = vweird.f32 %v173
  %vm181 = vmor %vm179, %vm180
  %v182 = vsel %vm181, %v173, %v178
  %v183 = vmul.f32 %v166, %v182
  %184 = vset.pattern.permute.xlu0 4
  %185 = vperm.xlu0 %184, %v124
  %v186 = vpop.permute.xlu0 %185
  %v188 = vmul.f32 %v183, %v186
  %189 = vset.pattern.permute.xlu0 5
  %190 = vperm.xlu0 %189, %v124
  %v191 = vpop.permute.xlu0 %190
  %v193 = vadd.f32 %v188, %v191
  %v194 = vmax.f32 %v193, 0.0
  %v195 = vld [vmem:[%s3] sm:$0xff]
  %v196 = vld [vmem:[%s3 + $0x8] sm:$0xff]
  %vm197 = vcmask 130048
  %v199 = vsel %vm197, %v194, 0
  %201 = vmatpush.msra.mxu0 0.0
  %202 = vmatpush.msra.mxu0 0.0
  %203 = vmatpush.msra.mxu0 0.0
  %204 = vmatpush.msra.mxu0 0.0
  %205 = vmatpush.msra.mxu0 0.0
  %206 = vmatpush.msra.mxu0 0.0
  %207 = vmatpush.msra.mxu0 0.0
  %208 = vmatpush.msra.mxu0 0.0
  %209 = vmatpush.msra.mxu0 0.0
  %210 = vmatpush.msra.mxu0 0.0
  %211 = vmatpush.msra.mxu0 0.0
  %212 = vmatpush.msra.mxu0 0.0
  %213 = vmatpush.msra.mxu0 0.0
  %214 = vmatpush.msra.mxu0 0.0
  %215 = vmatpush.msra.mxu0 %v196
  %216 = vmatpush.msra.mxu0 %v195
  %217 = vmatmul.f32.gmra.mxu0 %v199
  %v218 = vpop.f32.mrf.mxu0
  %v219 = vadd.f32 0.0, %v218
  %220 = vdwg.mxu0
  %221 = vrot.lane.b32.xlu0 %v194, 112
  %v222 = vpop.permute.xlu0 %221
  %v223 = vsel %vm197, %v222, 0
  %225 = vmatpush.msra.mxu0 0.0
  %226 = vmatpush.msra.mxu0 0.0
  %227 = vmatpush.msra.mxu0 0.0
  %228 = vmatpush.msra.mxu0 0.0
  %229 = vmatpush.msra.mxu0 0.0
  %230 = vmatpush.msra.mxu0 0.0
  %231 = vmatpush.msra.mxu0 0.0
  %232 = vmatpush.msra.mxu0 0.0
  %233 = vmatpush.msra.mxu0 0.0
  %234 = vmatpush.msra.mxu0 0.0
  %235 = vmatpush.msra.mxu0 0.0
  %236 = vmatpush.msra.mxu0 0.0
  %237 = vmatpush.msra.mxu0 0.0
  %238 = vmatpush.msra.mxu0 0.0
  %239 = vmatpush.msra.mxu0 %v196
  %240 = vmatpush.msra.mxu0 %v195
  %241 = vmatmul.f32.gmra.mxu0 %v223
  %v242 = vpop.f32.mrf.mxu0
  %v243 = vadd.f32 0.0, %v242
  %244 = vdwg.mxu0
  %246 = vrot.lane.b32.xlu0 %v243, 9
  %v247 = vpop.permute.xlu0 %246
  %vm249 = vcmask 72704
  %v250 = vsel %vm249, %v219, %v247
  %252 = vrot.lane.b32.xlu0 %v219, 119
  %v253 = vpop.permute.xlu0 %252
  %v255 = vsel %vm249, %v253, %v243
  %v257 = vrot.slane %v255, 6
  %vm259 = vcmask 1041408
  %v260 = vsel %vm259, %v250, %v257
  %v261 = vrot.slane %v124, 2
  %v262 = vsel %vm127, %v261, 0
  %v265 = vsel %vm131, %v260, 0
  %267 = vmatpush.msra.mxu0 0.0
  %268 = vmatpush.msra.mxu0 0.0
  %269 = vmatpush.msra.mxu0 0.0
  %270 = vmatpush.msra.mxu0 0.0
  %271 = vmatpush.msra.mxu0 0.0
  %272 = vmatpush.msra.mxu0 0.0
  %273 = vmatpush.msra.mxu0 0.0
  %274 = vmatpush.msra.mxu0 0.0
  %275 = vmatpush.msra.mxu0 0.0
  %276 = vmatpush.msra.mxu0 0.0
  %277 = vmatpush.msra.mxu0 0.0
  %278 = vmatpush.msra.mxu0 0.0
  %279 = vmatpush.msra.mxu0 0.0
  %280 = vmatpush.msra.mxu0 0.0
  %281 = vmatpush.msra.mxu0 0.0
  %282 = vmatpush.msra.mxu0 %v265
  %283 = vmatmul.f32.gmra.mxu0 %v262
  %v284 = vpop.f32.mrf.mxu0
  %v285 = vadd.f32 0.0, %v284
  %286 = vdwg.mxu0
  %vm287 = vcmask 142336
  %v288 = vsel %vm287, %v285, 0.0
  %289 = vadd.xlane.f32.xlu0 %v288
  %v290 = vpop.xlane.xlu0 %289
  %v291 = vrcp.pop 18.0
  %v292 = vmul.f32 18.0, %v291
  %v293 = vsub.f32 1.0, %v292
  %v294 = vmul.f32 %v291, %v293
  %v295 = vadd.f32 %v291, %v294
  %vm296 = vweird.f32 %v291
  %v297 = vsel %vm296, %v291, %v295
  %v298 = vmul.f32 %v290, %v297
  %v299 = vsub.f32 %v285, %v298
  %v300 = vmul.f32 %v299, %v299
  %v301 = vsel %vm287, %v300, 0.0
  %302 = vadd.xlane.f32.xlu0 %v301
  %v303 = vpop.xlane.xlu0 %302
  %v304 = vmul.f32 %v303, %v297
  %v305 = vadd.f32 %v304, 1e-05
  %v306 = vrsqrt.pop %v305
  %v307 = vmul.f32 %v306, %v305
  %v308 = vmul.f32 %v307, %v306
  %v309 = vmul.f32 0.5, %v308
  %v310 = vsub.f32 1.5, %v309
  %v311 = vmul.f32 %v306, %v310
  %vm312 = vweird.f32 %v305
  %vm313 = vweird.f32 %v306
  %vm314 = vmor %vm312, %vm313
  %v315 = vsel %vm314, %v306, %v311
  %v316 = vmul.f32 %v299, %v315
  %317 = vset.pattern.permute.xlu0 6
  %318 = vperm.xlu0 %317, %v124
  %v319 = vpop.permute.xlu0 %318
  %v321 = vmul.f32 %v316, %v319
  %322 = vset.pattern.permute.xlu0 7
  %323 = vperm.xlu0 %322, %v124
  %v324 = vpop.permute.xlu0 %323
  %v326 = vadd.f32 %v321, %v324
  %v327 = vmax.f32 %v326, 0.0
  %v328 = vld [vmem:[%s4] sm:$0xff]
  %v329 = vld [vmem:[%s4 + $0x8] sm:$0xff]
  %v330 = vld [vmem:[%s4 + $0x10] sm:$0x3]
  %v332 = vrot.slane %v327, 2
  %333 = vrot.lane.b32.xlu0 %v332, 9
  %v334 = vpop.permute.xlu0 %333
  %v336 = vsel %vm249, %v327, %v334
  %vm337 = vcmask 146432
  %v339 = vsel %vm337, %v336, 0
  %v342 = vsel %vm259, %v330, 0
  %344 = vmatpush.msra.mxu0 0.0
  %345 = vmatpush.msra.mxu0 0.0
  %346 = vmatpush.msra.mxu0 0.0
  %347 = vmatpush.msra.mxu0 0.0
  %348 = vmatpush.msra.mxu0 0.0
  %349 = vmatpush.msra.mxu0 0.0
  %350 = vmatpush.msra.mxu0 0.0
  %351 = vmatpush.msra.mxu0 0.0
  %352 = vmatpush.msra.mxu0 0.0
  %353 = vmatpush.msra.mxu0 0.0
  %354 = vmatpush.msra.mxu0 0.0
  %355 = vmatpush.msra.mxu0 0.0
  %356 = vmatpush.msra.mxu0 0.0
  %357 = vmatpush.msra.mxu0 %v342
  %358 = vmatpush.msra.mxu0 %v329
  %359 = vmatpush.msra.mxu0 %v328
  %360 = vmatmul.f32.gmra.mxu0 %v339
  %v361 = vpop.f32.mrf.mxu0
  %v362 = vadd.f32 0.0, %v361
  %363 = vdwg.mxu0
  %364 = vrot.lane.b32.xlu0 %v327, 119
  %v365 = vpop.permute.xlu0 %364
  %v368 = vsel %vm249, %v365, %v332
  %v370 = vsel %vm337, %v368, 0
  %372 = vmatpush.msra.mxu0 0.0
  %373 = vmatpush.msra.mxu0 0.0
  %374 = vmatpush.msra.mxu0 0.0
  %375 = vmatpush.msra.mxu0 0.0
  %376 = vmatpush.msra.mxu0 0.0
  %377 = vmatpush.msra.mxu0 0.0
  %378 = vmatpush.msra.mxu0 0.0
  %379 = vmatpush.msra.mxu0 0.0
  %380 = vmatpush.msra.mxu0 0.0
  %381 = vmatpush.msra.mxu0 0.0
  %382 = vmatpush.msra.mxu0 0.0
  %383 = vmatpush.msra.mxu0 0.0
  %384 = vmatpush.msra.mxu0 0.0
  %385 = vmatpush.msra.mxu0 %v342
  %386 = vmatpush.msra.mxu0 %v329
  %387 = vmatpush.msra.mxu0 %v328
  %388 = vmatmul.f32.gmra.mxu0 %v370
  %v389 = vpop.f32.mrf.mxu0
  %v390 = vadd.f32 0.0, %v389
  %391 = vdwg.mxu0
  %393 = vrot.lane.b32.xlu0 %v390, 16
  %v394 = vpop.permute.xlu0 %393
  %v396 = vsel %vm197, %v362, %v394
  %v397 = vadd.f32 %v194, %v396
  %v399 = vrot.slane %v124, 6
  %v400 = vrot.slane %v125, 6
  %v401 = vsel %vm259, %v399, %v400
  %vm402 = vcmask 15360
  %v403 = vsel %vm402, %v401, 0
  %v406 = vsel %vm259, %v397, 0
  %408 = vmatpush.msra.mxu0 0.0
  %409 = vmatpush.msra.mxu0 0.0
  %410 = vmatpush.msra.mxu0 0.0
  %411 = vmatpush.msra.mxu0 0.0
  %412 = vmatpush.msra.mxu0 0.0
  %413 = vmatpush.msra.mxu0 0.0
  %414 = vmatpush.msra.mxu0 0.0
  %415 = vmatpush.msra.mxu0 0.0
  %416 = vmatpush.msra.mxu0 0.0
  %417 = vmatpush.msra.mxu0 0.0
  %418 = vmatpush.msra.mxu0 0.0
  %419 = vmatpush.msra.mxu0 0.0
  %420 = vmatpush.msra.mxu0 0.0
  %421 = vmatpush.msra.mxu0 0.0
  %422 = vmatpush.msra.mxu0 0.0
  %423 = vmatpush.msra.mxu0 %v406
  %424 = vmatmul.f32.gmra.mxu0 %v403
  %v425 = vpop.f32.mrf.mxu0
  %v426 = vadd.f32 0.0, %v425
  %427 = vdwg.mxu0
  %v429 = vrot.slane %v426, 4
  %v431 = vsel %vm131, 0.0, %v429
  %v432 = vadd.f32 %v123, %v431
  %vm433 = vcmask 261120
  %434 = vst.msk [vmem:[%s5] sm:$0xff] %vm433, %v432
  // Predicated region
  $region22: #{ffc_forward.1} parent=0 // pred_check
    _
  $region23: #{ffc_forward.1} parent=0 // pred_check_branch
    %436 = sbr.rel (0) target = $region25
  $region24: #{ffc_forward.1} parent=0 // pred_region
    _
  $region25: #{ffc_forward.1} parent=0 // pred_fallthru
    _
  // Predicated region
  $region26: #{ffc_forward.1} parent=0 // pred_check
    _
  $region27: #{ffc_forward.1} parent=0 // pred_check_branch
    %438 = sbr.rel (0) target = $region29
  $region28: #{ffc_forward.1} parent=0 // pred_region
    _
  $region29: #{ffc_forward.1} parent=0 // pred_fallthru
    _

</llo_original>
